<compile_context>
chip_gen: v6e
topology: v6e:2x2x1
jax: 0.10.0
libtpu: 0.0.40
codegen_flags: <defaults>
</compile_context>

<pallas_src>
import functools

import jax
import jax.numpy as jnp
from jax.experimental import pallas as pl
from jax.experimental.pallas import tpu as pltpu

LANES = 128
MAX_BLOCK_ROWS = 1024      # (1024, 128) f32 = 512 KiB per input per block
EPS = 1e-7                 # DiceLoss eps
SMOOTH = 0.0               # DiceLoss smooth
NEG_SENTINEL = -1e30       # sigmoid(sentinel)=0, softplus(sentinel)=0


def _dice_bce_kernel(x_ref, t_ref, out_ref, acc_ref, *, n_valid):
    i = pl.program_id(0)
    block_rows = x_ref.shape[0]

    @pl.when(i == 0)
    def _init():
        acc_ref[...] = jnp.zeros_like(acc_ref)

    # Mask padded / out-of-bounds elements of the (possibly partial) last
    # block. Element indices fit in int32 for tensors < 2**31 elements.
    row = jax.lax.broadcasted_iota(jnp.int32, (block_rows, LANES), 0)
    col = jax.lax.broadcasted_iota(jnp.int32, (block_rows, LANES), 1)
    elem = (i * block_rows + row) * LANES + col
    valid = elem < n_valid

    x = jnp.where(valid, x_ref[...].astype(jnp.float32), NEG_SENTINEL)
    t = jnp.where(valid, t_ref[...].astype(jnp.float32), 0.0)

    # One exp per element, shared between sigmoid and the BCE softplus term.
    e = jnp.exp(-jnp.abs(x))                         # exp(-|x|)
    inv1pe = 1.0 / (1.0 + e)                         # 1 / (1 + exp(-|x|))
    sig = jnp.where(x >= 0.0, inv1pe, e * inv1pe)    # sigmoid(x)
    # numerically stable BCE-with-logits: max(x,0) - x*t + log1p(exp(-|x|))
    bce = jnp.maximum(x, 0.0) - x * t + jnp.log1p(e)

    # Collapse (block_rows, 128) -> (8, 128) per-lane partials using only
    # elementwise vreg adds (no cross-lane XLU work in the hot loop).
    def fold(v):
        return v.reshape(block_rows // 8, 8, LANES).sum(axis=0)

    acc_ref[0] += fold(sig * t)   # intersection
    acc_ref[1] += fold(sig)       # sum of predictions
    acc_ref[2] += fold(t)         # sum of targets
    acc_ref[3] += fold(bce)       # BCE numerator

    @pl.when(i == pl.num_programs(0) - 1)
    def _finalize():
        s_pt = jnp.sum(acc_ref[0])
        s_p = jnp.sum(acc_ref[1])
        s_t = jnp.sum(acc_ref[2])
        s_bce = jnp.sum(acc_ref[3])

        cardinality = s_p + s_t
        dice_score = (2.0 * s_pt + SMOOTH) / jnp.maximum(cardinality + SMOOTH, EPS)
        # loss *= (y_true.sum(dims) > 0); single class -> scalar; .mean() is identity
        dloss = (1.0 - dice_score) * (s_t > 0.0).astype(jnp.float32)
        bloss = s_bce / jnp.float32(n_valid)
        out_ref[0, 0] = 1.0 * dloss + 1.0 * bloss   # dice_weight=1, bce_weight=1


@jax.jit
def dice_bce_loss(y_pred, y_true):
    n = y_pred.size
    x = y_pred.reshape(-1)
    t = y_true.reshape(-1)

    # Round rows up to a whole number of (8, 128) vreg tiles. Only the tail is
    # padded (< 1024 elements); pad values are irrelevant (kernel masks them).
    rows = -(-n // LANES)
    rows = -(-rows // 8) * 8
    padded = rows * LANES
    if padded != n:
        x = jnp.pad(x, (0, padded - n))
        t = jnp.pad(t, (0, padded - n))
    x2 = x.reshape(rows, LANES)
    t2 = t.reshape(rows, LANES)

    block_rows = min(MAX_BLOCK_ROWS, rows)      # both multiples of 8
    grid = -(-rows // block_rows)

    out = pl.pallas_call(
        functools.partial(_dice_bce_kernel, n_valid=n),
        out_shape=jax.ShapeDtypeStruct((1, 1), jnp.float32),
        grid_spec=pltpu.PrefetchScalarGridSpec(
            num_scalar_prefetch=0,
            grid=(grid,),
            in_specs=[
                pl.BlockSpec((block_rows, LANES), lambda i: (i, 0)),
                pl.BlockSpec((block_rows, LANES), lambda i: (i, 0)),
            ],
            out_specs=pl.BlockSpec(memory_space=pltpu.MemorySpace.SMEM),
            scratch_shapes=[pltpu.VMEM((4, 8, LANES), jnp.float32)],
        ),
        compiler_params=pltpu.CompilerParams(
            dimension_semantics=("arbitrary",)),
    )(x2, t2)
    return out[0, 0]


def _reference_loss(y_pred, y_true):
    x = y_pred.astype(jnp.float32).reshape(-1)
    t = y_true.astype(jnp.float32).reshape(-1)
    p = jax.nn.sigmoid(x)
    inter = jnp.sum(p * t)
    card = jnp.sum(p) + jnp.sum(t)
    dice = (2.0 * inter + SMOOTH) / jnp.maximum(card + SMOOTH, EPS)
    dloss = (1.0 - dice) * (jnp.sum(t) > 0.0).astype(jnp.float32)
    bce = jnp.mean(jnp.maximum(x, 0.0) - x * t + jnp.log1p(jnp.exp(-jnp.abs(x))))
    return dloss + bce


if __name__ == "__main__":
    key = jax.random.PRNGKey(0)
    k1, k2 = jax.random.split(key)
    # NCHW: batch=2, channels=1 (binary segmentation), spatial=16x16
    y_pred = jax.random.normal(k1, (2, 1, 16, 16), dtype=jnp.float32)
    y_true = (jax.random.uniform(k2, (2, 1, 16, 16)) > 0.5).astype(jnp.float32)

    loss = dice_bce_loss(y_pred, y_true)
    jax.block_until_ready(loss)

    ref = _reference_loss(y_pred, y_true)
    assert jnp.allclose(loss, ref, rtol=1e-5, atol=1e-5), (loss, ref)

    print("KERNEL_OK")
</pallas_src>

<mosaic_0001>
module attributes {stable_mosaic.version = 11 : i64} {
  func.func @_dice_bce_kernel(%arg0: i32, %arg1: memref<8x128xf32, #tpu.memory_space<vmem>>, %arg2: memref<8x128xf32, #tpu.memory_space<vmem>>, %arg3: memref<1x1xf32, #tpu.memory_space<smem>>, %arg4: memref<4x8x128xf32, #tpu.memory_space<vmem>>) attributes {dimension_semantics = [#tpu.dimension_semantics<arbitrary>], iteration_bounds = array<i64: 1>, scalar_prefetch = 0 : i64, scratch_operands = 1 : i64, tpu.core_type = #tpu.core_type<tc>, window_params = [{transform_indices = @transform_0, window_bounds = array<i64: 8, 128>}, {transform_indices = @transform_1, window_bounds = array<i64: 8, 128>}, {transform_indices = @transform_2, window_bounds = array<i64: 1, 1>}]} {
    %c0_i32 = arith.constant 0 : i32
    %0 = arith.cmpi eq, %arg0, %c0_i32 : i32
    %1 = arith.extui %0 : i1 to i32
    %c0_i32_0 = arith.constant 0 : i32
    %2 = arith.cmpi ne, %1, %c0_i32_0 : i32
    scf.if %2 {
      %cst_37 = arith.constant 0.000000e+00 : f32
      %73 = vector.broadcast %cst_37 : f32 to vector<4x8x128xf32>
      %c0_38 = arith.constant 0 : index
      %c0_39 = arith.constant 0 : index
      %c0_40 = arith.constant 0 : index
      %74 = vector.load %arg4[%c0_38, %c0_39, %c0_40] : memref<4x8x128xf32, #tpu.memory_space<vmem>>, vector<4x8x128xf32>
      tpu.vector_store %arg4[%c0_38, %c0_39, %c0_40], %73 {strides = array<i32>} : memref<4x8x128xf32, #tpu.memory_space<vmem>>, vector<4x8x128xf32>,
    } else {
    }
    %3 = tpu.iota {dimensions = array<i32: 0>} : vector<8x128xi32>
    %4 = tpu.iota {dimensions = array<i32: 1>} : vector<8x128xi32>
    %c8_i32 = arith.constant 8 : i32
    %5 = arith.muli %arg0, %c8_i32 : i32
    %6 = vector.broadcast %5 : i32 to vector<8x128xi32>
    %7 = arith.addi %6, %3 : vector<8x128xi32>
    %c128_i32 = arith.constant 128 : i32
    %8 = vector.broadcast %c128_i32 : i32 to vector<8x128xi32>
    %9 = arith.muli %7, %8 : vector<8x128xi32>
    %10 = arith.addi %9, %4 : vector<8x128xi32>
    %c512_i32 = arith.constant 512 : i32
    %11 = vector.broadcast %c512_i32 : i32 to vector<8x128xi32>
    %12 = arith.cmpi slt, %10, %11 : vector<8x128xi32>
    %c0 = arith.constant 0 : index
    %c0_1 = arith.constant 0 : index
    %13 = vector.load %arg1[%c0, %c0_1] : memref<8x128xf32, #tpu.memory_space<vmem>>, vector<8x128xf32>
    %cst = arith.constant -1.000000e+30 : f32
    %14 = vector.broadcast %cst : f32 to vector<8x128xf32>
    %15 = arith.select %12, %13, %14 : vector<8x128xi1>, vector<8x128xf32>
    %c0_2 = arith.constant 0 : index
    %c0_3 = arith.constant 0 : index
    %16 = vector.load %arg2[%c0_2, %c0_3] : memref<8x128xf32, #tpu.memory_space<vmem>>, vector<8x128xf32>
    %cst_4 = arith.constant 0.000000e+00 : f32
    %17 = vector.broadcast %cst_4 : f32 to vector<8x128xf32>
    %18 = arith.select %12, %16, %17 : vector<8x128xi1>, vector<8x128xf32>
    %19 = math.absf %15 : vector<8x128xf32>
    %cst_5 = arith.constant 0.000000e+00 : f32
    %20 = vector.broadcast %cst_5 : f32 to vector<8x128xf32>
    %21 = arith.subf %20, %19 : vector<8x128xf32>
    %22 = math.exp %21 : vector<8x128xf32>
    %cst_6 = arith.constant 1.000000e+00 : f32
    %23 = vector.broadcast %cst_6 : f32 to vector<8x128xf32>
    %24 = arith.addf %23, %22 : vector<8x128xf32>
    %cst_7 = arith.constant 1.000000e+00 : f32
    %25 = vector.broadcast %cst_7 : f32 to vector<8x128xf32>
    %26 = arith.divf %25, %24 : vector<8x128xf32>
    %cst_8 = arith.constant 0.000000e+00 : f32
    %27 = vector.broadcast %cst_8 : f32 to vector<8x128xf32>
    %28 = arith.cmpf oge, %15, %27 : vector<8x128xf32>
    %29 = arith.mulf %22, %26 : vector<8x128xf32>
    %30 = arith.select %28, %26, %29 : vector<8x128xi1>, vector<8x128xf32>
    %cst_9 = arith.constant 0.000000e+00 : f32
    %31 = vector.broadcast %cst_9 : f32 to vector<8x128xf32>
    %32 = arith.maximumf %15, %31 : vector<8x128xf32>
    %33 = arith.mulf %15, %18 : vector<8x128xf32>
    %34 = arith.subf %32, %33 : vector<8x128xf32>
    %35 = math.log1p %22 : vector<8x128xf32>
    %36 = arith.addf %34, %35 : vector<8x128xf32>
    %c0_10 = arith.constant 0 : index
    %c0_11 = arith.constant 0 : index
    %c0_12 = arith.constant 0 : index
    %37 = vector.load %arg4[%c0_10, %c0_11, %c0_12] : memref<4x8x128xf32, #tpu.memory_space<vmem>>, vector<1x8x128xf32>
    %38 = vector.shape_cast %37 : vector<1x8x128xf32> to vector<8x128xf32>
    %39 = arith.mulf %30, %18 : vector<8x128xf32>
    %40 = vector.shape_cast %39 : vector<8x128xf32> to vector<1x8x128xf32>
    %cst_13 = arith.constant dense<0.000000e+00> : vector<8x128xf32>
    %41 = vector.multi_reduction <add>, %40, %cst_13 [0] : vector<1x8x128xf32> to vector<8x128xf32>
    %42 = arith.addf %38, %41 : vector<8x128xf32>
    %c0_14 = arith.constant 0 : index
    %c0_15 = arith.constant 0 : index
    %c0_16 = arith.constant 0 : index
    %43 = vector.load %arg4[%c0_14, %c0_15, %c0_16] : memref<4x8x128xf32, #tpu.memory_space<vmem>>, vector<1x8x128xf32>
    %44 = vector.shape_cast %43 : vector<1x8x128xf32> to vector<8x128xf32>
    %45 = vector.shape_cast %42 : vector<8x128xf32> to vector<1x8x128xf32>
    tpu.vector_store %arg4[%c0_14, %c0_15, %c0_16], %45 {strides = array<i32>} : memref<4x8x128xf32, #tpu.memory_space<vmem>>, vector<1x8x128xf32>,
    %c1 = arith.constant 1 : index
    %c0_17 = arith.constant 0 : index
    %c0_18 = arith.constant 0 : index
    %46 = vector.load %arg4[%c1, %c0_17, %c0_18] : memref<4x8x128xf32, #tpu.memory_space<vmem>>, vector<1x8x128xf32>
    %47 = vector.shape_cast %46 : vector<1x8x128xf32> to vector<8x128xf32>
    %48 = vector.shape_cast %30 : vector<8x128xf32> to vector<1x8x128xf32>
    %cst_19 = arith.constant dense<0.000000e+00> : vector<8x128xf32>
    %49 = vector.multi_reduction <add>, %48, %cst_19 [0] : vector<1x8x128xf32> to vector<8x128xf32>
    %50 = arith.addf %47, %49 : vector<8x128xf32>
    %c1_20 = arith.constant 1 : index
    %c0_21 = arith.constant 0 : index
    %c0_22 = arith.constant 0 : index
    %51 = vector.load %arg4[%c1_20, %c0_21, %c0_22] : memref<4x8x128xf32, #tpu.memory_space<vmem>>, vector<1x8x128xf32>
    %52 = vector.shape_cast %51 : vector<1x8x128xf32> to vector<8x128xf32>
    %53 = vector.shape_cast %50 : vector<8x128xf32> to vector<1x8x128xf32>
    tpu.vector_store %arg4[%c1_20, %c0_21, %c0_22], %53 {strides = array<i32>} : memref<4x8x128xf32, #tpu.memory_space<vmem>>, vector<1x8x128xf32>,
    %c2 = arith.constant 2 : index
    %c0_23 = arith.constant 0 : index
    %c0_24 = arith.constant 0 : index
    %54 = vector.load %arg4[%c2, %c0_23, %c0_24] : memref<4x8x128xf32, #tpu.memory_space<vmem>>, vector<1x8x128xf32>
    %55 = vector.shape_cast %54 : vector<1x8x128xf32> to vector<8x128xf32>
    %56 = vector.shape_cast %18 : vector<8x128xf32> to vector<1x8x128xf32>
    %cst_25 = arith.constant dense<0.000000e+00> : vector<8x128xf32>
    %57 = vector.multi_reduction <add>, %56, %cst_25 [0] : vector<1x8x128xf32> to vector<8x128xf32>
    %58 = arith.addf %55, %57 : vector<8x128xf32>
    %c2_26 = arith.constant 2 : index
    %c0_27 = arith.constant 0 : index
    %c0_28 = arith.constant 0 : index
    %59 = vector.load %arg4[%c2_26, %c0_27, %c0_28] : memref<4x8x128xf32, #tpu.memory_space<vmem>>, vector<1x8x128xf32>
    %60 = vector.shape_cast %59 : vector<1x8x128xf32> to vector<8x128xf32>
    %61 = vector.shape_cast %58 : vector<8x128xf32> to vector<1x8x128xf32>
    tpu.vector_store %arg4[%c2_26, %c0_27, %c0_28], %61 {strides = array<i32>} : memref<4x8x128xf32, #tpu.memory_space<vmem>>, vector<1x8x128xf32>,
    %c3 = arith.constant 3 : index
    %c0_29 = arith.constant 0 : index
    %c0_30 = arith.constant 0 : index
    %62 = vector.load %arg4[%c3, %c0_29, %c0_30] : memref<4x8x128xf32, #tpu.memory_space<vmem>>, vector<1x8x128xf32>
    %63 = vector.shape_cast %62 : vector<1x8x128xf32> to vector<8x128xf32>
    %64 = vector.shape_cast %36 : vector<8x128xf32> to vector<1x8x128xf32>
    %cst_31 = arith.constant dense<0.000000e+00> : vector<8x128xf32>
    %65 = vector.multi_reduction <add>, %64, %cst_31 [0] : vector<1x8x128xf32> to vector<8x128xf32>
    %66 = arith.addf %63, %65 : vector<8x128xf32>
    %c3_32 = arith.constant 3 : index
    %c0_33 = arith.constant 0 : index
    %c0_34 = arith.constant 0 : index
    %67 = vector.load %arg4[%c3_32, %c0_33, %c0_34] : memref<4x8x128xf32, #tpu.memory_space<vmem>>, vector<1x8x128xf32>
    %68 = vector.shape_cast %67 : vector<1x8x128xf32> to vector<8x128xf32>
    %69 = vector.shape_cast %66 : vector<8x128xf32> to vector<1x8x128xf32>
    tpu.vector_store %arg4[%c3_32, %c0_33, %c0_34], %69 {strides = array<i32>} : memref<4x8x128xf32, #tpu.memory_space<vmem>>, vector<1x8x128xf32>,
    %c0_i32_35 = arith.constant 0 : i32
    %70 = arith.cmpi eq, %arg0, %c0_i32_35 : i32
    %71 = arith.extui %70 : i1 to i32
    %c0_i32_36 = arith.constant 0 : i32
    %72 = arith.cmpi ne, %71, %c0_i32_36 : i32
    scf.if %72 {
      %c0_37 = arith.constant 0 : index
      %c0_38 = arith.constant 0 : index
      %c0_39 = arith.constant 0 : index
      %73 = vector.load %arg4[%c0_37, %c0_38, %c0_39] : memref<4x8x128xf32, #tpu.memory_space<vmem>>, vector<1x8x128xf32>
      %74 = vector.shape_cast %73 : vector<1x8x128xf32> to vector<8x128xf32>
      %75 = vector.shape_cast %74 : vector<8x128xf32> to vector<1x8x128xf32>
      %cst_40 = arith.constant dense<0.000000e+00> : vector<1xf32>
      %76 = vector.multi_reduction <add>, %75, %cst_40 [1, 2] : vector<1x8x128xf32> to vector<1xf32>
      %77 = vector.shape_cast %76 : vector<1xf32> to vector<1x1x1xf32>
      %78 = vector.extract %77[0, 0, 0] : f32 from vector<1x1x1xf32>
      %c1_41 = arith.constant 1 : index
      %c0_42 = arith.constant 0 : index
      %c0_43 = arith.constant 0 : index
      %79 = vector.load %arg4[%c1_41, %c0_42, %c0_43] : memref<4x8x128xf32, #tpu.memory_space<vmem>>, vector<1x8x128xf32>
      %80 = vector.shape_cast %79 : vector<1x8x128xf32> to vector<8x128xf32>
      %81 = vector.shape_cast %80 : vector<8x128xf32> to vector<1x8x128xf32>
      %cst_44 = arith.constant dense<0.000000e+00> : vector<1xf32>
      %82 = vector.multi_reduction <add>, %81, %cst_44 [1, 2] : vector<1x8x128xf32> to vector<1xf32>
      %83 = vector.shape_cast %82 : vector<1xf32> to vector<1x1x1xf32>
      %84 = vector.extract %83[0, 0, 0] : f32 from vector<1x1x1xf32>
      %c2_45 = arith.constant 2 : index
      %c0_46 = arith.constant 0 : index
      %c0_47 = arith.constant 0 : index
      %85 = vector.load %arg4[%c2_45, %c0_46, %c0_47] : memref<4x8x128xf32, #tpu.memory_space<vmem>>, vector<1x8x128xf32>
      %86 = vector.shape_cast %85 : vector<1x8x128xf32> to vector<8x128xf32>
      %87 = vector.shape_cast %86 : vector<8x128xf32> to vector<1x8x128xf32>
      %cst_48 = arith.constant dense<0.000000e+00> : vector<1xf32>
      %88 = vector.multi_reduction <add>, %87, %cst_48 [1, 2] : vector<1x8x128xf32> to vector<1xf32>
      %89 = vector.shape_cast %88 : vector<1xf32> to vector<1x1x1xf32>
      %90 = vector.extract %89[0, 0, 0] : f32 from vector<1x1x1xf32>
      %c3_49 = arith.constant 3 : index
      %c0_50 = arith.constant 0 : index
      %c0_51 = arith.constant 0 : index
      %91 = vector.load %arg4[%c3_49, %c0_50, %c0_51] : memref<4x8x128xf32, #tpu.memory_space<vmem>>, vector<1x8x128xf32>
      %92 = vector.shape_cast %91 : vector<1x8x128xf32> to vector<8x128xf32>
      %93 = vector.shape_cast %92 : vector<8x128xf32> to vector<1x8x128xf32>
      %cst_52 = arith.constant dense<0.000000e+00> : vector<1xf32>
      %94 = vector.multi_reduction <add>, %93, %cst_52 [1, 2] : vector<1x8x128xf32> to vector<1xf32>
      %95 = vector.shape_cast %94 : vector<1xf32> to vector<1x1x1xf32>
      %96 = vector.extract %95[0, 0, 0] : f32 from vector<1x1x1xf32>
      %97 = arith.addf %84, %90 : f32
      %cst_53 = arith.constant 2.000000e+00 : f32
      %98 = arith.mulf %cst_53, %78 : f32
      %cst_54 = arith.constant 0.000000e+00 : f32
      %99 = arith.addf %98, %cst_54 : f32
      %cst_55 = arith.constant 0.000000e+00 : f32
      %100 = arith.addf %97, %cst_55 : f32
      %cst_56 = arith.constant 1.000000e-07 : f32
      %101 = arith.maximumf %100, %cst_56 : f32
      %102 = arith.divf %99, %101 : f32
      %cst_57 = arith.constant 1.000000e+00 : f32
      %103 = arith.subf %cst_57, %102 : f32
      %cst_58 = arith.constant 0.000000e+00 : f32
      %104 = arith.cmpf ogt, %90, %cst_58 : f32
      %105 = arith.extui %104 : i1 to i32
      %106 = arith.sitofp %105 : i32 to f32
      %107 = arith.mulf %103, %106 : f32
      %cst_59 = arith.constant 5.120000e+02 : f32
      %108 = arith.divf %96, %cst_59 : f32
      %cst_60 = arith.constant 1.000000e+00 : f32
      %109 = arith.mulf %cst_60, %107 : f32
      %cst_61 = arith.constant 1.000000e+00 : f32
      %110 = arith.mulf %cst_61, %108 : f32
      %111 = arith.addf %109, %110 : f32
      %c0_62 = arith.constant 0 : index
      %c0_63 = arith.constant 0 : index
      %112 = memref.load %arg3[%c0_62, %c0_63] : memref<1x1xf32, #tpu.memory_space<smem>>
      memref.store %111, %arg3[%c0_62, %c0_63] : memref<1x1xf32, #tpu.memory_space<smem>>
    } else {
    }
    return
  }
  func.func @transform_0(%arg0: i32) -> (i32, i32) {
    %c0_i32 = arith.constant 0 : i32
    %c0_i32_0 = arith.constant 0 : i32
    return %arg0, %c0_i32 : i32, i32
  }
  func.func @transform_1(%arg0: i32) -> (i32, i32) {
    %c0_i32 = arith.constant 0 : i32
    %c0_i32_0 = arith.constant 0 : i32
    return %arg0, %c0_i32 : i32, i32
  }
  func.func @transform_2(%arg0: i32) -> (i32, i32) {
    %c0_i32 = arith.constant 0 : i32
    %c0_i32_0 = arith.constant 0 : i32
    %c0_i32_1 = arith.constant 0 : i32
    return %c0_i32, %c0_i32_0 : i32, i32
  }
}

</mosaic_0001>

<llo_original>
// kernel: dice_bce_loss.1
$region0: #{dice_bce_loss.1}
  #allocation0 [shape = 'u32[]', space=smem, size = 0x4, offset = 0x4, fixed_abs, tag = 'smem constant byte address 0x4 - core index']
  #allocation1 [shape = 'u32[144,128]{1,0:T(1,128)}', space=vmem, size = 0x12000, scoped, tag = 'internal scratch']
  #allocation2 [shape = 'f32[4,8,128]{2,1,0:T(8,128)}', space=vmem, size = 0x4000, scoped, tag = 'scratch operand']
  %s0 = inlined_call_operand.vmem [shape: f32[8,128], index: 0, kind: input, shape index: {}]
  %s1 = inlined_call_operand.vmem [shape: f32[8,128], index: 1, kind: input, shape index: {}]
  %s2 = inlined_call_operand.hbm [shape: f32[1,1], index: 2, kind: output, shape index: {}]
  %s3 = sld [smem:[#allocation0]]
  $region26: #{dice_bce_loss.1} parent=0
    _
  %s5 = ssub.s32 1, %s3
  %s6 = scalar_select 0, %s5, %s3
  $region1: #{dice_bce_loss.1} parent=0
    #allocation3 [shape = 'u8[512]{0}', space=smem, size = 0x200, scoped, tag = 'output window, operand 0, single buffered']
    #allocation4 [shape = 's32[1]{0}', space=sflag, size = 0x4, scoped, tag = 'scoped memory for dice_bce_loss.1']
    %7 = vsyncpa [#allocation4], 0
    // Predicated region
    $region2: #{dice_bce_loss.1} parent=1 // pred_check
      _
    $region3: #{dice_bce_loss.1} parent=1 // pred_check_branch
      %9 = sbr.rel (0) target = $region5
    $region4: #{dice_bce_loss.1} parent=1 // pred_region
      _
    $region5: #{dice_bce_loss.1} parent=1 // pred_fallthru
      _
    // Predicated region
    $region6: #{dice_bce_loss.1} parent=1 // pred_check
      _
    $region7: #{dice_bce_loss.1} parent=1 // pred_check_branch
      %11 = sbr.rel (0) target = $region9
    $region8: #{dice_bce_loss.1} parent=1 // pred_region
      _
    $region9: #{dice_bce_loss.1} parent=1 // pred_fallthru
      _
    %p12 = scmp.eq.s32.totalorder 0, 0
    // Predicated region
    $region10: #{dice_bce_loss.1} parent=1 // pred_check
      %p13 = pneg %p12
    $region11: #{dice_bce_loss.1} parent=1 // pred_check_branch
      %15 = sbr.rel (%p13) target = $region13
    $region12: #{dice_bce_loss.1} parent=1 // pred_region
      %16 = vst [vmem:[#allocation2] sm:$0xff] 0.0
      %17 = vst [vmem:[#allocation2 + $0x8] sm:$0xff] 0.0
      %18 = vst [vmem:[#allocation2 + $0x10] sm:$0xff] 0.0
      %19 = vst [vmem:[#allocation2 + $0x18] sm:$0xff] 0.0
    $region13: #{dice_bce_loss.1} parent=1 // pred_fallthru
      _
    %v20 = vlaneseq
    %v21 = vshrl.u32 %v20, 7
    %v22 = vlaneseq
    %v23 = vand.u32 %v22, 127
    %s24 = smul.u32 0, 8
    %v25 = vstv %s24
    %v26 = vadd.s32 %v25, %v21
    %v27 = vmul.u32 %v26, 128
    %v28 = vadd.s32 %v27, %v23
    %vm29 = vcmp.lt.s32.totalorder %v28, 512
    %v30 = vld [vmem:[%s0] sm:$0xff]
    %v31 = vsel %vm29, %v30, -1e+30
    %v32 = vld [vmem:[%s1] sm:$0xff]
    %v33 = vsel %vm29, %v32, 0.0
    %v34 = vand.u32 2147483647, %v31
    %v35 = vsub.f32 0.0, %v34
    %v36 = vmul.f32 %v35, 1.442695
    %v37 = vpow.pop %v36
    %v38 = vadd.f32 %v37, 1.0
    %v39 = vrcp.pop %v38
    %v40 = vmul.f32 1.0, %v39
    %vm41 = vcmp.ge.f32.partialorder %v31, 0.0
    %v42 = vmul.f32 %v37, %v40
    %v43 = vsel %vm41, %v40, %v42
    %v44 = vmax.f32 %v31, 0.0
    %v45 = vmul.f32 %v31, %v33
    %v46 = vsub.f32 %v44, %v45
    %v47 = vadd.f32 %v37, 1.0
    %v48 = vlog2.pop %v47
    %v49 = vmul.f32 %v48, 0.6931472
    %v50 = vmul.f32 -0.5, %v37
    %v51 = vadd.f32 %v50, 1.0
    %v52 = vmul.f32 %v51, %v37
    %v53 = vand.u32 2147483647, %v37
    %vm54 = vcmp.lt.f32.partialorder %v53, 0.0004427343
    %v55 = vsel %vm54, %v52, %v49
    %v56 = vadd.f32 %v46, %v55
    %v57 = vld [vmem:[#allocation2] sm:$0xff]
    %v58 = vmul.f32 %v43, %v33
    %v59 = vadd.f32 %v58, 0.0
    %v60 = vadd.f32 %v57, %v59
    %61 = vst [vmem:[#allocation2] sm:$0xff] %v60
    %s62 = scalar_lea.vmem [#allocation2], 8
    %v63 = vld [vmem:[%s62] sm:$0xff]
    %v64 = vadd.f32 %v43, 0.0
    %v65 = vadd.f32 %v63, %v64
    %66 = vst [vmem:[%s62] sm:$0xff] %v65
    %s67 = scalar_lea.vmem [#allocation2], 16
    %v68 = vld [vmem:[%s67] sm:$0xff]
    %v69 = vadd.f32 %v33, 0.0
    %v70 = vadd.f32 %v68, %v69
    %71 = vst [vmem:[%s67] sm:$0xff] %v70
    %s72 = scalar_lea.vmem [#allocation2], 24
    %v73 = vld [vmem:[%s72] sm:$0xff]
    %v74 = vadd.f32 %v56, 0.0
    %v75 = vadd.f32 %v73, %v74
    %76 = vst [vmem:[%s72] sm:$0xff] %v75
    // Predicated region
    $region14: #{dice_bce_loss.1} parent=1 // pred_check
      %p77 = pneg %p12
    $region15: #{dice_bce_loss.1} parent=1 // pred_check_branch
      %79 = sbr.rel (%p77) target = $region17
    $region16: #{dice_bce_loss.1} parent=1 // pred_region
      %v80 = vld [vmem:[#allocation2] sm:$0xff]
      %81 = vadd.xlane.f32.xlu0 %v80
      %v82 = vpop.xlane.xlu0 %81
      %v83 = vrot.slane %v82, 4
      %v84 = vadd.f32 %v82, %v83
      %v85 = vrot.slane %v84, 2
      %v86 = vadd.f32 %v84, %v85
      %v87 = vrot.slane %v86, 1
      %v88 = vadd.f32 %v86, %v87
      %s89 = vtos %v88
      %v90 = vld [vmem:[%s62] sm:$0xff]
      %91 = vadd.xlane.f32.xlu0 %v90
      %v92 = vpop.xlane.xlu0 %91
      %v93 = vrot.slane %v92, 4
      %v94 = vadd.f32 %v92, %v93
      %v95 = vrot.slane %v94, 2
      %v96 = vadd.f32 %v94, %v95
      %v97 = vrot.slane %v96, 1
      %v98 = vadd.f32 %v96, %v97
      %s99 = vtos %v98
      %v100 = vld [vmem:[%s67] sm:$0xff]
      %101 = vadd.xlane.f32.xlu0 %v100
      %v102 = vpop.xlane.xlu0 %101
      %v103 = vrot.slane %v102, 4
      %v104 = vadd.f32 %v102, %v103
      %v105 = vrot.slane %v104, 2
      %v106 = vadd.f32 %v104, %v105
      %v107 = vrot.slane %v106, 1
      %v108 = vadd.f32 %v106, %v107
      %s109 = vtos %v108
      %v110 = vld [vmem:[%s72] sm:$0xff]
      %111 = vadd.xlane.f32.xlu0 %v110
      %v112 = vpop.xlane.xlu0 %111
      %v113 = vrot.slane %v112, 4
      %v114 = vadd.f32 %v112, %v113
      %v115 = vrot.slane %v114, 2
      %v116 = vadd.f32 %v114, %v115
      %v117 = vrot.slane %v116, 1
      %v118 = vadd.f32 %v116, %v117
      %s119 = vtos %v118
      %s120 = sadd.f32 %s99, %s109
      %s121 = smul.f32 %s89, 2.0
      %s122 = sadd.f32 %s121, 0.0
      %s123 = sadd.f32 %s120, 0.0
      %s124 = smax.f32 %s123, 1e-07
      %v125 = vstv %s124
      %v126 = vrcp.pop %v125
      %s127 = vtos %v126
      %s128 = smul.f32 %s122, %s127
      %s129 = ssub.f32 1.0, %s128
      %p130 = scmp.gt.f32.partialorder %s109, 0.0
      %s131 = scalar_select %p130, 1, 0
      %s132 = scvt.s32.f32 %s131
      %s133 = smul.f32 %s129, %s132
      %v134 = vrcp.pop 512.0
      %s135 = vtos %v134
      %s136 = smul.f32 %s119, %s135
      %s137 = sadd.f32 %s133, %s136
      %s138 = scalar_lea.smem [#allocation3], 0
      %139 = sst [smem:[%s138]] %s137
    $region17: #{dice_bce_loss.1} parent=1 // pred_fallthru
      _
    // Predicated region
    $region18: #{dice_bce_loss.1} parent=1 // pred_check
      _
    $region19: #{dice_bce_loss.1} parent=1 // pred_check_branch
      %141 = sbr.rel (0) target = $region21
    $region20: #{dice_bce_loss.1} parent=1 // pred_region
      %s143 = ssub.s32 16, 16
      %144 = vsyncadd [#allocation4], %s143
      %147 = dma.smem_to_hbm [#allocation3], 16, %s2, [#allocation4]
    $region21: #{dice_bce_loss.1} parent=1 // pred_fallthru
      _
    // Predicated region
    $region22: #{dice_bce_loss.1} parent=1 // pred_check
      _
    $region23: #{dice_bce_loss.1} parent=1 // pred_check_branch
      %149 = sbr.rel (0) target = $region25
    $region24: #{dice_bce_loss.1} parent=1 // pred_region
      %150 = dma.done [#allocation4], 16
    $region25: #{dice_bce_loss.1} parent=1 // pred_fallthru
      _
    %151 = sfence
    %152 = vsyncpa [#allocation4], 1

</llo_original>
